<compile_context>
chip_gen: v5e
topology: v5e:2x2
jax: 0.10.0
libtpu: 0.0.40
codegen_flags: <defaults>
</compile_context>

<pallas_src>
from abc import ABC, abstractmethod
from typing import Dict, List, Optional, Set

import jax
import jax.numpy as jnp
from jax.experimental import pallas as pl
from jax.experimental.pallas import tpu as pltpu

VERBOSE = False
CircuitTensor = jax.Array

ROWS = 16     # sublane-aligned; 2 row tiles -> exercises v7x 2-TC sharding
FEATS = 128   # lane-aligned


# ----------------------------------------------------------------------------
# Fused Pallas kernel: out = ((x + y) * x) @ W        (W arrives already bf16)
# ----------------------------------------------------------------------------
def _fused_dag_kernel(x_ref, y_ref, w_ref, o_ref):
    # f32 VPU add/mul (free filler under the DMA/MXU slots; v5e has no bf16 VPU).
    fused = (x_ref[...] + y_ref[...]) * x_ref[...]
    # bf16 operands, f32 accumulation: MXU-native on v5e/v6e/v7x.
    o_ref[...] = jnp.dot(
        fused.astype(jnp.bfloat16),
        w_ref[...],                      # already bf16 (cast once in wrapper)
        preferred_element_type=jnp.float32,
    )


def _choose_row_tile(rows: int) -> int:
    """Row tile: largest <= 512 that still gives >= 2 grid steps (v7x has two
    TensorCores), rounded to a multiple of 8 sublanes.  Tiny inputs get one
    full-height block."""
    if rows <= 8:
        return rows
    tm = ((rows + 15) // 16) * 8       # ~ rows/2, multiple of 8  -> grid >= 2
    return min(512, max(8, tm))


@jax.jit
def fused_add_mul_matmul(x: jax.Array, y: jax.Array, w: jax.Array) -> jax.Array:
    rows, feats_in = x.shape
    feats_out = w.shape[1]
    tm = _choose_row_tile(rows)
    grid = (pl.cdiv(rows, tm),)

    # Cast W once outside the kernel: halves W's HBM->VMEM traffic and removes
    # the per-grid-step VPU cast.  (Matmul operands are bf16 either way.)
    w_bf16 = w.astype(jnp.bfloat16)

    cost = pl.CostEstimate(
        flops=2 * rows * feats_in * feats_out + 2 * rows * feats_in,
        transcendentals=0,
        bytes_accessed=(2 * rows * feats_in * 4)      # x, y (f32)
                       + (feats_in * feats_out * 2)   # W (bf16)
                       + (rows * feats_out * 4),      # out (f32)
    )

    return pl.pallas_call(
        _fused_dag_kernel,
        out_shape=jax.ShapeDtypeStruct((rows, feats_out), jnp.float32),
        grid_spec=pltpu.PrefetchScalarGridSpec(
            num_scalar_prefetch=0,
            grid=grid,
            in_specs=[
                pl.BlockSpec((tm, feats_in), lambda i: (i, 0)),          # x rows
                pl.BlockSpec((tm, feats_in), lambda i: (i, 0)),          # y rows
                pl.BlockSpec((feats_in, feats_out), lambda i: (0, 0)),   # W resident (bf16)
            ],
            out_specs=pl.BlockSpec((tm, feats_out), lambda i: (i, 0)),
        ),
        compiler_params=pltpu.CompilerParams(
            dimension_semantics=("parallel",),
            vmem_limit_bytes=32 * 1024 * 1024,
        ),
        cost_estimate=cost,
    )(x, y, w_bf16)


# ----------------------------------------------------------------------------
# OperatorFn / DagOperator — faithful port of the PyTorch control flow
# ----------------------------------------------------------------------------
class OperatorFn(ABC):

    @classmethod
    @abstractmethod
    def name(cls) -> str:
        pass

    @classmethod
    @abstractmethod
    def single_inputs(cls) -> Set[str]:
        pass

    @classmethod
    @abstractmethod
    def array_inputs(cls) -> Dict[str, Set[str]]:
        pass

    @abstractmethod
    def do_forward(self, tensors: List[CircuitTensor]):
        pass

    def set_output(self, output):
        self.output = output

    def forward(self, tensors: List[CircuitTensor]):
        rval = self.do_forward(tensors)
        if VERBOSE:
            inputs = {name: tensors[idx] for name, idx in self.single_mapping.items()}
            print(f"Operator {self.name()} returns {rval}")
            for name, inp in inputs.items():
                print(f"Input {name}: {inp}")
        tensors[self.fill_idx] = rval
        return rval

    def __init__(self,
                 single_inputs: Dict[str, int],
                 array_inputs: Dict[str, List[Dict[str, int]]],
                 fill_idx: int):
        super().__init__()
        self.fill_idx = fill_idx
        self.output = None
        self.single_mapping = single_inputs
        self.array_mapping = array_inputs
        expected_single = self.single_inputs()
        expected_array_dict = self.array_inputs()
        expected_array = set(expected_array_dict.keys())
        has_single = set(single_inputs.keys())
        has_array = set(array_inputs.keys())
        if expected_single != has_single:
            raise ValueError(
                f"Tensor operator {self.name()} got single inputs {has_single} "
                f"but expected {expected_single}")
        if expected_array != has_array:
            raise ValueError(
                f"Tensor operator {self.name()} got array inputs {has_array} "
                f"but expected {expected_array}")
        for batch_name, batch in expected_array_dict.items():
            list_of_batches = array_inputs[batch_name]
            for in_batch in list_of_batches:
                in_keys = set(in_batch.keys())
                if in_keys != batch:
                    raise ValueError(
                        f"Array input had input batch with keys {in_keys} "
                        f"but expected {batch}")


class FusedAddMulMatMulOperator(OperatorFn):
    """Single operator whose do_forward dispatches the fused Pallas kernel.

    Semantically equivalent to the 3-op DAG
        s3 = lhs + rhs ; s4 = s3 * lhs ; out = s4 @ W
    but executed as one kernel (no intermediate HBM round-trips).
    """

    @classmethod
    def name(cls) -> str:
        return "fused_add_mul_matmul"

    @classmethod
    def single_inputs(cls) -> Set[str]:
        return {"lhs", "rhs", "w"}

    @classmethod
    def array_inputs(cls) -> Dict[str, Set[str]]:
        return {}

    def do_forward(self, tensors: List[CircuitTensor]):
        x = tensors[self.single_mapping["lhs"]]
        y = tensors[self.single_mapping["rhs"]]
        w = tensors[self.single_mapping["w"]]
        return fused_add_mul_matmul(x, y, w)


class DagOperator:
    """JAX/Pallas port of DagOperator.forward()."""

    def __init__(self, storage: List[Optional[CircuitTensor]],
                 ordered: List[OperatorFn]):
        self.storage = storage
        self.ordered = ordered

    def forward(self):
        last_returned = None
        for operator in self.ordered:
            last_returned = operator.forward(self.storage)
        assert last_returned is self.storage[-1]
        return last_returned


# ----------------------------------------------------------------------------
# Main
# ----------------------------------------------------------------------------
if __name__ == "__main__":
    key = jax.random.PRNGKey(0)
    kx, ky, kw = jax.random.split(key, 3)

    x = jax.random.normal(kx, (ROWS, FEATS), dtype=jnp.float32)
    y = jax.random.normal(ky, (ROWS, FEATS), dtype=jnp.float32)
    # Deterministic weight (synthetic "parameter" of the matmul).
    w = jax.random.normal(kw, (FEATS, FEATS), dtype=jnp.float32) * 0.05

    # storage slots: 0:x  1:y  2:W  3:final fused output (intermediate
    # zero buffers were fused away).
    storage: List[Optional[CircuitTensor]] = [x, y, w, None]

    ordered = [
        FusedAddMulMatMulOperator({"lhs": 0, "rhs": 1, "w": 2}, {}, fill_idx=3),
    ]

    dag = DagOperator(storage, ordered)
    out = dag.forward()
    out = jax.block_until_ready(out)

    # Reference checks.  Matmul operands are bf16 (f32 accumulation), so
    # compare tightly against a bf16-rounded-operand reference and loosely
    # against the pure-f32 math.
    # TODO(synk): if the OperatorFn contract requires full f32 matmul
    # precision, drop the bf16 casts (kernel stays HBM-bound either way).
    fused_f32 = (x + y) * x
    ref_bf16 = jnp.dot(
        fused_f32.astype(jnp.bfloat16).astype(jnp.float32),
        w.astype(jnp.bfloat16).astype(jnp.float32),
    )
    ref_f32 = fused_f32 @ w

    assert out.shape == (ROWS, FEATS) and out.dtype == jnp.float32
    assert jnp.allclose(out, ref_bf16, rtol=1e-3, atol=1e-3)
    assert jnp.allclose(out, ref_f32, rtol=1e-1, atol=1e-1)

    print("KERNEL_OK")
</pallas_src>

<mosaic_0001>
module attributes {stable_mosaic.version = 11 : i64} {
  func.func @_fused_dag_kernel(%arg0: i32, %arg1: memref<8x128xf32, #tpu.memory_space<vmem>>, %arg2: memref<8x128xf32, #tpu.memory_space<vmem>>, %arg3: memref<128x128xbf16, #tpu.memory_space<vmem>>, %arg4: memref<8x128xf32, #tpu.memory_space<vmem>>) attributes {dimension_semantics = [#tpu.dimension_semantics<parallel>], iteration_bounds = array<i64: 2>, scalar_prefetch = 0 : i64, scratch_operands = 0 : i64, tpu.core_type = #tpu.core_type<tc>, window_params = [{transform_indices = @transform_0, window_bounds = array<i64: 8, 128>}, {transform_indices = @transform_1, window_bounds = array<i64: 8, 128>}, {pipeline_mode = #tpu.pipeline_mode<synchronous>, transform_indices = @transform_2, window_bounds = array<i64: 128, 128>}, {transform_indices = @transform_3, window_bounds = array<i64: 8, 128>}]} {
    %c0 = arith.constant 0 : index
    %c0_0 = arith.constant 0 : index
    %0 = vector.load %arg1[%c0, %c0_0] : memref<8x128xf32, #tpu.memory_space<vmem>>, vector<8x128xf32>
    %c0_1 = arith.constant 0 : index
    %c0_2 = arith.constant 0 : index
    %1 = vector.load %arg2[%c0_1, %c0_2] : memref<8x128xf32, #tpu.memory_space<vmem>>, vector<8x128xf32>
    %2 = arith.addf %0, %1 : vector<8x128xf32>
    %c0_3 = arith.constant 0 : index
    %c0_4 = arith.constant 0 : index
    %3 = vector.load %arg1[%c0_3, %c0_4] : memref<8x128xf32, #tpu.memory_space<vmem>>, vector<8x128xf32>
    %4 = arith.mulf %2, %3 : vector<8x128xf32>
    %5 = arith.truncf %4 : vector<8x128xf32> to vector<8x128xbf16>
    %c0_5 = arith.constant 0 : index
    %c0_6 = arith.constant 0 : index
    %6 = vector.load %arg3[%c0_5, %c0_6] : memref<128x128xbf16, #tpu.memory_space<vmem>>, vector<128x128xbf16>
    %cst = arith.constant dense<0.000000e+00> : vector<8x128xf32>
    %7 = tpu.matmul %5, %6, %cst {dimension_numbers = #tpu.dot_dimension_numbers<[1], [0], [0], [1], [0, 0, 1, 1], [], []>} : vector<8x128xbf16>, vector<128x128xbf16>, vector<8x128xf32> -> vector<8x128xf32>
    %c0_7 = arith.constant 0 : index
    %c0_8 = arith.constant 0 : index
    %8 = vector.load %arg4[%c0_7, %c0_8] : memref<8x128xf32, #tpu.memory_space<vmem>>, vector<8x128xf32>
    tpu.vector_store %arg4[%c0_7, %c0_8], %7 {strides = array<i32>} : memref<8x128xf32, #tpu.memory_space<vmem>>, vector<8x128xf32>,
    return
  }
  func.func @transform_0(%arg0: i32) -> (i32, i32) {
    %c0_i32 = arith.constant 0 : i32
    %c0_i32_0 = arith.constant 0 : i32
    return %arg0, %c0_i32 : i32, i32
  }
  func.func @transform_1(%arg0: i32) -> (i32, i32) {
    %c0_i32 = arith.constant 0 : i32
    %c0_i32_0 = arith.constant 0 : i32
    return %arg0, %c0_i32 : i32, i32
  }
  func.func @transform_2(%arg0: i32) -> (i32, i32) {
    %c0_i32 = arith.constant 0 : i32
    %c0_i32_0 = arith.constant 0 : i32
    %c0_i32_1 = arith.constant 0 : i32
    return %c0_i32, %c0_i32_0 : i32, i32
  }
  func.func @transform_3(%arg0: i32) -> (i32, i32) {
    %c0_i32 = arith.constant 0 : i32
    %c0_i32_0 = arith.constant 0 : i32
    return %arg0, %c0_i32 : i32, i32
  }
}

</mosaic_0001>

<llo_original>
// kernel: fused_add_mul_matmul.1
$region0: #{fused_add_mul_matmul.1}
  #allocation0 [shape = 'u32[]', space=smem, size = 0x4, offset = 0x4, fixed_abs, tag = 'smem constant byte address 0x4 - core index']
  #allocation1 [shape = 'u32[72,128]{1,0:T(1,128)}', space=vmem, size = 0x9000, scoped, tag = 'internal scratch']
  %s0 = inlined_call_operand.vmem [shape: f32[16,128], index: 0, kind: input, shape index: {}]
  %s1 = inlined_call_operand.vmem [shape: f32[16,128], index: 1, kind: input, shape index: {}]
  %s2 = inlined_call_operand.vmem [shape: bf16[128,128], index: 2, kind: input, shape index: {}]
  %s3 = inlined_call_operand.hbm [shape: f32[16,128], index: 3, kind: output, shape index: {}]
  %s4 = sld [smem:[#allocation0]]
  $region45: #{fused_add_mul_matmul.1} parent=0
    _
  %s6 = ssub.s32 1, %s4
  %s7 = scalar_select 0, %s6, %s4
  $region1: #{fused_add_mul_matmul.1} parent=0
    #allocation2 [shape = 'u8[8192]{0}', space=vmem, size = 0x2000, scoped, tag = 'output window, operand 0']
    #allocation3 [shape = 's32[2]{0}', space=sflag, size = 0x8, scoped, tag = 'scoped memory for fused_add_mul_matmul.1']
    %8 = vsyncpa [#allocation3], 0
    %s9 = scalar_lea.sflag [#allocation3], 1
    %10 = vsyncpa %s9, 0
    loop: start=0, step=1, limit=4
    $region2: #{fused_add_mul_matmul.1} parent=1 // loop_pre_header
      _
    $region3: #{fused_add_mul_matmul.1} parent=1 // loop_header
      %s12 = sphi 0, %s16
      %p13 = scmp.ge.s32.totalorder %s12, 4
      %s22 = sphi 0, %s24
      %s25 = sphi 0, %s22
      %s26 = sphi 0, %s25
      %s42 = sphi 0, %s26
      %s48 = sphi 0, %s50
      %s51 = sphi 0, %s48
      %s52 = sphi 0, %s51
      %s68 = sphi 0, %s52
      %s72 = sphi 0, %s72
      %s74 = sphi 0, %s72
      %s75 = sphi 0, %s74
      %s89 = sphi 0, %s75
      %s95 = sphi 0, %s97
      %s98 = sphi 0, %s95
      %s99 = sphi 0, %s98
      %s115 = sphi 0, %s99
    $region4: #{fused_add_mul_matmul.1} parent=1 // loop_header_branch
      %15 = sbr.rel (%p13) target = $region8
    $region5: #{fused_add_mul_matmul.1} parent=1 // loop_body
      %s17 = ssub.s32 %s12, 1
      %s18 = ssub.s32 %s12, 2
      %s19 = sadd.s32 %s12, 1
      %s20 = ssub.s32 %s12, %s19
      %p21 = scmp.eq.s32.totalorder %s20, 0
      %s23 = sadd.s32 %s22, 1
      %s24 = scalar_select %p21, %s22, %s23
      %p27 = pneg %p21
      %p28 = scmp.eq.s32.totalorder %s12, 1
      %p29 = por %p27, %p28
      %p30 = scmp.ne.s32.totalorder %s22, %s25
      %p31 = scmp.eq.s32.totalorder %s12, 0
      %p32 = por %p30, %p31
      %p33 = scmp.ne.s32.totalorder %s22, %s25
      %p34 = scmp.eq.s32.totalorder %s17, 1
      %p35 = por %p33, %p34
      %p36 = scmp.ne.s32.totalorder %s25, %s26
      %p37 = scmp.eq.s32.totalorder %s17, 0
      %p38 = por %p36, %p37
      %p39 = scmp.ne.s32.totalorder %s25, %s26
      %p40 = scmp.eq.s32.totalorder %s18, 1
      %p41 = por %p39, %p40
      %p43 = scmp.ne.s32.totalorder %s26, %s42
      %p44 = scmp.eq.s32.totalorder %s18, 0
      %p45 = por %p43, %p44
      %s46 = ssub.s32 %s12, %s19
      %p47 = scmp.eq.s32.totalorder %s46, 0
      %s49 = sadd.s32 %s48, 1
      %s50 = scalar_select %p47, %s48, %s49
      %p53 = pneg %p47
      %p54 = scmp.eq.s32.totalorder %s12, 1
      %p55 = por %p53, %p54
      %p56 = scmp.ne.s32.totalorder %s48, %s51
      %p57 = scmp.eq.s32.totalorder %s12, 0
      %p58 = por %p56, %p57
      %p59 = scmp.ne.s32.totalorder %s48, %s51
      %p60 = scmp.eq.s32.totalorder %s17, 1
      %p61 = por %p59, %p60
      %p62 = scmp.ne.s32.totalorder %s51, %s52
      %p63 = scmp.eq.s32.totalorder %s17, 0
      %p64 = por %p62, %p63
      %p65 = scmp.ne.s32.totalorder %s51, %s52
      %p66 = scmp.eq.s32.totalorder %s18, 1
      %p67 = por %p65, %p66
      %p69 = scmp.ne.s32.totalorder %s52, %s68
      %p70 = scmp.eq.s32.totalorder %s18, 0
      %p71 = por %p69, %p70
      %s73 = sadd.s32 %s72, 1
      %p76 = scmp.eq.s32.totalorder %s12, 1
      %p77 = scmp.ne.s32.totalorder %s72, %s74
      %p78 = scmp.eq.s32.totalorder %s12, 0
      %p79 = por %p77, %p78
      %p80 = scmp.ne.s32.totalorder %s72, %s74
      %p81 = scmp.eq.s32.totalorder %s17, 1
      %p82 = por %p80, %p81
      %p83 = scmp.ne.s32.totalorder %s74, %s75
      %p84 = scmp.eq.s32.totalorder %s17, 0
      %p85 = por %p83, %p84
      %p86 = scmp.ne.s32.totalorder %s74, %s75
      %p87 = scmp.eq.s32.totalorder %s18, 1
      %p88 = por %p86, %p87
      %p90 = scmp.ne.s32.totalorder %s75, %s89
      %p91 = scmp.eq.s32.totalorder %s18, 0
      %p92 = por %p90, %p91
      %s93 = ssub.s32 %s12, %s19
      %p94 = scmp.eq.s32.totalorder %s93, 0
      %s96 = sadd.s32 %s95, 1
      %s97 = scalar_select %p94, %s95, %s96
      %p100 = pneg %p94
      %p101 = scmp.eq.s32.totalorder %s12, 1
      %p102 = por %p100, %p101
      %p103 = scmp.ne.s32.totalorder %s95, %s98
      %p104 = scmp.eq.s32.totalorder %s12, 0
      %p105 = por %p103, %p104
      %p106 = scmp.ne.s32.totalorder %s95, %s98
      %p107 = scmp.eq.s32.totalorder %s17, 1
      %p108 = por %p106, %p107
      %p109 = scmp.ne.s32.totalorder %s98, %s99
      %p110 = scmp.eq.s32.totalorder %s17, 0
      %p111 = por %p109, %p110
      %p112 = scmp.ne.s32.totalorder %s98, %s99
      %p113 = scmp.eq.s32.totalorder %s18, 1
      %p114 = por %p112, %p113
      %p116 = scmp.ne.s32.totalorder %s99, %s115
      %p117 = scmp.eq.s32.totalorder %s18, 0
      %p118 = por %p116, %p117
      %p119 = scmp.le.s32.totalorder 1, %s12
      %p120 = scmp.lt.s32.totalorder %s12, 3
      %p121 = pnand %p119, %p120
      %p122 = pneg %p121
      // Predicated region
      $region9: #{fused_add_mul_matmul.1} parent=5 // pred_check
        _
      $region10: #{fused_add_mul_matmul.1} parent=5 // pred_check_branch
        %124 = sbr.rel (%p121) target = $region12
      $region11: #{fused_add_mul_matmul.1} parent=5 // pred_region
        %s125 = ssub.s32 %s12, 1
        // Predicated region
        $region13: #{fused_add_mul_matmul.1} parent=11 // pred_check
          %p126 = pneg %p85
        $region14: #{fused_add_mul_matmul.1} parent=11 // pred_check_branch
          %128 = sbr.rel (%p126) target = $region16
        $region15: #{fused_add_mul_matmul.1} parent=11 // pred_region
          _
        $region16: #{fused_add_mul_matmul.1} parent=11 // pred_fallthru
          _
      $region12: #{fused_add_mul_matmul.1} parent=5 // pred_fallthru
        _
      %p129 = scmp.lt.s32.totalorder %s12, 2
      // Predicated region
      $region17: #{fused_add_mul_matmul.1} parent=5 // pred_check
        %p130 = pneg %p129
      $region18: #{fused_add_mul_matmul.1} parent=5 // pred_check_branch
        %132 = sbr.rel (%p130) target = $region20
      $region19: #{fused_add_mul_matmul.1} parent=5 // pred_region
        // Predicated region
        $region21: #{fused_add_mul_matmul.1} parent=19 // pred_check
          %p133 = pneg %p32
        $region22: #{fused_add_mul_matmul.1} parent=19 // pred_check_branch
          %135 = sbr.rel (%p133) target = $region24
        $region23: #{fused_add_mul_matmul.1} parent=19 // pred_region
          %p136 = scmp.lt.s32.totalorder %s12, 1
          %s137 = scalar_select %p136, %s12, 1
          %s138 = smul.addr %s137, 8
          %s139 = scalar_lea.vmem %s0, %s138
        $region24: #{fused_add_mul_matmul.1} parent=19 // pred_fallthru
          _
        // Predicated region
        $region25: #{fused_add_mul_matmul.1} parent=19 // pred_check
          %p140 = pneg %p58
        $region26: #{fused_add_mul_matmul.1} parent=19 // pred_check_branch
          %142 = sbr.rel (%p140) target = $region28
        $region27: #{fused_add_mul_matmul.1} parent=19 // pred_region
          %p143 = scmp.lt.s32.totalorder %s12, 1
          %s144 = scalar_select %p143, %s12, 1
          %s145 = smul.addr %s144, 8
          %s146 = scalar_lea.vmem %s1, %s145
        $region28: #{fused_add_mul_matmul.1} parent=19 // pred_fallthru
          _
      $region20: #{fused_add_mul_matmul.1} parent=5 // pred_fallthru
        _
      %p147 = scmp.le.s32.totalorder 1, %s12
      %p148 = scmp.lt.s32.totalorder %s12, 3
      %p149 = pnand %p147, %p148
      %p150 = pneg %p149
      // Predicated region
      $region29: #{fused_add_mul_matmul.1} parent=5 // pred_check
        _
      $region30: #{fused_add_mul_matmul.1} parent=5 // pred_check_branch
        %152 = sbr.rel (%p149) target = $region32
      $region31: #{fused_add_mul_matmul.1} parent=5 // pred_region
        %s153 = ssub.s32 %s12, 1
        %p154 = scmp.lt.s32.totalorder %s17, 1
        %s155 = scalar_select %p154, %s17, 1
        %s156 = smul.addr %s155, 8
        %s157 = scalar_lea.vmem %s0, %s156
        %p158 = pneg %p38
        %p159 = pneg %p35
        %p160 = scmp.lt.s32.totalorder %s17, 1
        %s161 = scalar_select %p160, %s17, 1
        %s162 = smul.addr %s161, 8
        %s163 = scalar_lea.vmem %s1, %s162
        %p164 = pneg %p64
        %p165 = pneg %p61
        %p166 = pneg %p85
        %p167 = pneg %p82
        %p168 = pneg %p111
        %p169 = pneg %p108
        %s170 = sand.u32 %s98, 1
        %s171 = scalar_lea.sflag [#allocation3], %s170
        %s172 = sand.u32 %s98, 1
        %s173 = smul.addr %s172, 8
        %s174 = scalar_lea.vmem [#allocation2], %s173
        %p175 = scmp.lt.s32.totalorder %s17, 1
        %s176 = scalar_select %p175, %s17, 1
        %s177 = smul.addr %s176, 8
        %s178 = scalar_lea.vmem %s0, %s177
        %p179 = scmp.lt.s32.totalorder %s17, 1
        %s180 = scalar_select %p179, %s17, 1
        %s181 = smul.addr %s180, 8
        %s182 = scalar_lea.vmem %s1, %s181
        %v183 = vld [vmem:[%s178] sm:$0xff]
        %v184 = vld [vmem:[%s182] sm:$0xff]
        %v185 = vadd.f32 %v183, %v184
        %v186 = vmul.f32 %v185, %v183
        %v187 = vpack.c.bf16 %v186, %v186
        %v188 = vld [vmem:[%s2] sm:$0xf]
        %v189 = vld [vmem:[%s2 + $0x4] sm:$0xf]
        %v190 = vld [vmem:[%s2 + $0x8] sm:$0xf]
        %v191 = vld [vmem:[%s2 + $0xc] sm:$0xf]
        %v192 = vld [vmem:[%s2 + $0x10] sm:$0xf]
        %v193 = vld [vmem:[%s2 + $0x14] sm:$0xf]
        %v194 = vld [vmem:[%s2 + $0x18] sm:$0xf]
        %v195 = vld [vmem:[%s2 + $0x1c] sm:$0xf]
        %v196 = vld [vmem:[%s2 + $0x20] sm:$0xf]
        %v197 = vld [vmem:[%s2 + $0x24] sm:$0xf]
        %v198 = vld [vmem:[%s2 + $0x28] sm:$0xf]
        %v199 = vld [vmem:[%s2 + $0x2c] sm:$0xf]
        %v200 = vld [vmem:[%s2 + $0x30] sm:$0xf]
        %v201 = vld [vmem:[%s2 + $0x34] sm:$0xf]
        %v202 = vld [vmem:[%s2 + $0x38] sm:$0xf]
        %v203 = vld [vmem:[%s2 + $0x3c] sm:$0xf]
        %v220 = vunpack.c.l.b16 %v188
        %v221 = vunpack.c.l.b16 %v189
        %v222 = vunpack.c.l.b16 %v190
        %v223 = vunpack.c.l.b16 %v191
        %v224 = vunpack.c.l.b16 %v192
        %v225 = vunpack.c.l.b16 %v193
        %v226 = vunpack.c.l.b16 %v194
        %v227 = vunpack.c.l.b16 %v195
        %v228 = vunpack.c.l.b16 %v196
        %v229 = vunpack.c.l.b16 %v197
        %v230 = vunpack.c.l.b16 %v198
        %v231 = vunpack.c.l.b16 %v199
        %v232 = vunpack.c.l.b16 %v200
        %v233 = vunpack.c.l.b16 %v201
        %v234 = vunpack.c.l.b16 %v202
        %v235 = vunpack.c.l.b16 %v203
        %v236 = vpack.c.b16 %v221, %v220
        %v237 = vpack.c.b16 %v223, %v222
        %v238 = vpack.c.b16 %v225, %v224
        %v239 = vpack.c.b16 %v227, %v226
        %v240 = vpack.c.b16 %v229, %v228
        %v241 = vpack.c.b16 %v231, %v230
        %v242 = vpack.c.b16 %v233, %v232
        %v243 = vpack.c.b16 %v235, %v234
        %252 = vmatpush.bf16.msra.mxu0 %v243
        %253 = vmatpush.bf16.msra.mxu0 %v242
        %254 = vmatpush.bf16.msra.mxu0 %v241
        %255 = vmatpush.bf16.msra.mxu0 %v240
        %256 = vmatpush.bf16.msra.mxu0 %v239
        %257 = vmatpush.bf16.msra.mxu0 %v238
        %258 = vmatpush.bf16.msra.mxu0 %v237
        %259 = vmatpush.bf16.msra.mxu0 %v236
        %260 = vmatmul.bf16.gmra.mxu0 %v187
        %v261 = vpop.f32.mrf.mxu0
        %v262 = vadd.f32 0.0, %v261
        %v263 = vpop.f32.mrf.mxu0
        %264 = vdwg.mxu0
        %265 = vst [vmem:[%s174] sm:$0xff] %v262
        %s266 = sand.u32 %s98, 1
        %s267 = scalar_lea.sflag [#allocation3], %s266
        %s268 = sand.u32 %s98, 1
        %s269 = smul.addr %s268, 8
        %s270 = scalar_lea.vmem [#allocation2], %s269
        // Predicated region
        $region33: #{fused_add_mul_matmul.1} parent=31 // pred_check
          %p271 = pneg %p108
        $region34: #{fused_add_mul_matmul.1} parent=31 // pred_check_branch
          %273 = sbr.rel (%p271) target = $region36
        $region35: #{fused_add_mul_matmul.1} parent=31 // pred_region
          %275 = vsyncadd %s267, 0
          %s276 = smul.addr %s17, 8
          %s277 = scalar_lea.hbm %s3, %s276
          %s279 = sshll.u32 %s270, 4
          %s280 = int_to_ptr.vmem [resolvable:$true] %s279
          %s281 = sshll.u32 %s277, 4
          %s282 = int_to_ptr.hbm [resolvable:$true] %s281
          %284 = dma.vmem_to_hbm [thread:$0]  %s280, 128, %s282, %s267
        $region36: #{fused_add_mul_matmul.1} parent=31 // pred_fallthru
          _
      $region32: #{fused_add_mul_matmul.1} parent=5 // pred_fallthru
        _
      %p285 = scmp.le.s32.totalorder 2, %s12
      // Predicated region
      $region37: #{fused_add_mul_matmul.1} parent=5 // pred_check
        %p286 = pneg %p285
      $region38: #{fused_add_mul_matmul.1} parent=5 // pred_check_branch
        %288 = sbr.rel (%p286) target = $region40
      $region39: #{fused_add_mul_matmul.1} parent=5 // pred_region
        %s289 = ssub.s32 %s12, 2
        // Predicated region
        $region41: #{fused_add_mul_matmul.1} parent=39 // pred_check
          %p290 = pneg %p114
        $region42: #{fused_add_mul_matmul.1} parent=39 // pred_check_branch
          %292 = sbr.rel (%p290) target = $region44
        $region43: #{fused_add_mul_matmul.1} parent=39 // pred_region
          %s293 = sand.u32 %s99, 1
          %s294 = scalar_lea.sflag [#allocation3], %s293
          %s295 = sand.u32 %s99, 1
          %s296 = smul.addr %s295, 8
          %s297 = scalar_lea.vmem [#allocation2], %s296
          %299 = dma.done %s294, 128
        $region44: #{fused_add_mul_matmul.1} parent=39 // pred_fallthru
          _
      $region40: #{fused_add_mul_matmul.1} parent=5 // pred_fallthru
        _
    $region6: #{fused_add_mul_matmul.1} parent=1 // loop_footer
      %s16 = sadd.s32 1, %s12
    $region7: #{fused_add_mul_matmul.1} parent=1 // loop_footer_branch
      %11 = sbr.rel target = $region3
    $region8: #{fused_add_mul_matmul.1} parent=1 // loop_exit
      _
    %300 = vsyncpa [#allocation3], 1
    %s301 = scalar_lea.sflag [#allocation3], 1
    %302 = vsyncpa %s301, 1

</llo_original>
